<compile_context>
chip_gen: v5e
topology: v5e:2x2
jax: 0.10.0
libtpu: 0.0.40
codegen_flags: <defaults>
</compile_context>

<pallas_src>
import math

import jax
import jax.numpy as jnp
from jax import lax
from jax.experimental import pallas as pl
from jax.experimental.pallas import tpu as pltpu


_LANE = 128
_BN_EPS = 1e-5


def _round_up(n, m):
    return ((n + m - 1) // m) * m


def _gelu_exact(x):
    # PyTorch nn.GELU() default = exact erf formulation (keep f32 for v5e VPU/EUP).
    return 0.5 * x * (1.0 + lax.erf(x * (1.0 / math.sqrt(2.0))))


def _make_categorizer_kernel(num_hidden_pairs):
    """num_hidden_pairs = num_of_categorizer_layers - 1 (Linear+BN pairs)."""

    def kernel(*refs):
        # refs = [x_f32, W0_bf16, b0_f32, (Wi_bf16, bn_i_f32[3,fout]) * pairs, out]
        out_ref = refs[-1]
        x = refs[0][...]                                   # (B, d_in) f32

        # first layer + GELU: bf16 operands on the MXU, f32 accumulation.
        w0 = refs[1][...]                                  # (d_in, F0p) bf16
        b0 = refs[2][...]                                  # (1, F0p)   f32
        x = jnp.dot(x.astype(jnp.bfloat16), w0,
                    preferred_element_type=jnp.float32) + b0
        x = _gelu_exact(x)

        idx = 3
        for i in range(num_hidden_pairs):
            w = refs[idx][...]                             # (Fin_p, Fout_p) bf16
            bn = refs[idx + 1][...]                        # (3, Fout_p) f32
            idx += 2
            bias = bn[0:1, :]
            gamma = bn[1:2, :]
            beta = bn[2:3, :]

            # Linear (bf16 MXU, f32 accumulate)
            x = jnp.dot(x.astype(jnp.bfloat16), w,
                        preferred_element_type=jnp.float32) + bias

            # BatchNorm1d with batch statistics (track_running_stats=False),
            # biased variance, eps=1e-5, folded into a single scale+shift pass.
            mean = jnp.mean(x, axis=0, keepdims=True)
            d = x - mean
            var = jnp.mean(d * d, axis=0, keepdims=True)
            scale = gamma * lax.rsqrt(var + _BN_EPS)       # rsqrt -> EUP slot
            x = d * scale + beta

            # GELU on all but the last (Linear, BN) pair
            if i != num_hidden_pairs - 1:
                x = _gelu_exact(x)

        out_ref[...] = jax.nn.sigmoid(x)

    return kernel


def categorizer_forward(x, packed_params, last_size):
    """x: (B, J, D).  packed_params: [W0_bf16, b0, (Wi_bf16, bn_i)*pairs] (padded)."""
    b = x.shape[0]
    x2d = x.reshape(b, -1).astype(jnp.float32)
    num_hidden_pairs = (len(packed_params) - 2) // 2
    out_padded = packed_params[-2].shape[1]        # last Linear's padded out_features

    kernel = _make_categorizer_kernel(num_hidden_pairs)

    vmem = pl.BlockSpec(memory_space=pltpu.MemorySpace.VMEM)
    n_inputs = 1 + len(packed_params)

    # --- cost estimate (advisory, helps XLA schedule this small custom call) ---
    weights = packed_params[0::2]                  # W0, W1, ..., W_pairs
    flops = sum(2 * b * w.shape[0] * w.shape[1] for w in weights)
    # erf per GELU output, sigmoid on the last layer, rsqrt per BN column.
    transcendentals = sum(b * w.shape[1] for w in weights) + \
        sum(w.shape[1] for w in weights[1:])
    bytes_accessed = int(
        x2d.size * x2d.dtype.itemsize
        + sum(p.size * p.dtype.itemsize for p in packed_params)
        + b * out_padded * 4)

    # --- explicit scoped-VMEM budget (default is only 16/32 MiB) ---
    max_width = max(w.shape[1] for w in weights)
    act_bytes = 4 * b * max_width * 4              # a few live f32 activation slabs
    vmem_limit = int(min(96 * 1024 * 1024,
                         max(4 * 1024 * 1024, 2 * (bytes_accessed + act_bytes))))

    out = pl.pallas_call(
        kernel,
        out_shape=jax.ShapeDtypeStruct((b, out_padded), jnp.float32),
        in_specs=[vmem] * n_inputs,
        out_specs=vmem,
        compiler_params=pltpu.CompilerParams(vmem_limit_bytes=vmem_limit),
        cost_estimate=pl.CostEstimate(flops=int(flops),
                                      transcendentals=int(transcendentals),
                                      bytes_accessed=bytes_accessed),
    )(x2d, *packed_params)
    return out[:, :last_size]


def build_params(options, key):
    """Deterministic synthetic parameters with the module's logical shapes (f32)."""
    num_layers = options["num_of_categorizer_layers"]
    jets = options["num_of_jets"]
    mdim = options["model_dim"]
    d_in = jets * mdim
    first = 2 * d_in
    last = len(options["event_topology"])
    step = (first - last) / (num_layers - 1)

    sizes = [d_in, first]
    for i in range(num_layers - 1):
        sizes.append(round(first - (i + 1) * step))
    assert sizes[-1] == last

    params = []
    # first_layer: Linear(d_in -> first)
    key, k1, k2 = jax.random.split(key, 3)
    params.append(jax.random.normal(k1, (d_in, first), jnp.float32) * 0.05)
    params.append(jax.random.normal(k2, (1, first), jnp.float32) * 0.05)

    # hidden (Linear, BatchNorm1d) pairs
    for i in range(num_layers - 1):
        fin, fout = sizes[i + 1], sizes[i + 2]
        key, kw, kb = jax.random.split(key, 3)
        params.append(jax.random.normal(kw, (fin, fout), jnp.float32) * 0.05)
        params.append(jax.random.normal(kb, (1, fout), jnp.float32) * 0.05)
        params.append(jnp.ones((1, fout), jnp.float32))   # BN gamma
        params.append(jnp.zeros((1, fout), jnp.float32))  # BN beta
    return params


def pack_params(params):
    """Pad out_features to multiples of 128 lanes, cast weights to bf16, and pack
    per-layer (bias, gamma, beta) into one (3, fout_pad) f32 slab."""
    num_hidden_pairs = (len(params) - 2) // 4
    packed = []

    w0, b0 = params[0], params[1]
    f0 = w0.shape[1]
    f0p = _round_up(f0, _LANE)
    w0p = jnp.zeros((w0.shape[0], f0p), jnp.bfloat16).at[:, :f0].set(
        w0.astype(jnp.bfloat16))
    b0p = jnp.zeros((1, f0p), jnp.float32).at[:, :f0].set(b0)
    packed += [w0p, b0p]

    prev_pad = f0p
    idx = 2
    for _ in range(num_hidden_pairs):
        w, bb, g, be = params[idx], params[idx + 1], params[idx + 2], params[idx + 3]
        idx += 4
        fin, fout = w.shape
        foutp = _round_up(fout, _LANE)
        wp = jnp.zeros((prev_pad, foutp), jnp.bfloat16).at[:fin, :fout].set(
            w.astype(jnp.bfloat16))
        bn = jnp.zeros((3, foutp), jnp.float32)
        bn = bn.at[1, :].set(1.0)            # gamma=1 on padded cols (values stay 0)
        bn = bn.at[0, :fout].set(bb[0])
        bn = bn.at[1, :fout].set(g[0])
        bn = bn.at[2, :fout].set(be[0])
        packed += [wp, bn]
        prev_pad = foutp
    return packed


def reference_forward(x, params):
    """Pure-JAX reference (same bf16-operand / f32-accumulate matmul path)."""
    b = x.shape[0]
    h = x.reshape(b, -1).astype(jnp.float32)
    num_hidden_pairs = (len(params) - 2) // 4

    def bf16_dot(a, w):
        return jnp.dot(a.astype(jnp.bfloat16), w.astype(jnp.bfloat16),
                       preferred_element_type=jnp.float32)

    h = bf16_dot(h, params[0]) + params[1]
    h = _gelu_exact(h)
    idx = 2
    for i in range(num_hidden_pairs):
        w, bb, g, be = params[idx], params[idx + 1], params[idx + 2], params[idx + 3]
        idx += 4
        h = bf16_dot(h, w) + bb
        mean = jnp.mean(h, axis=0, keepdims=True)
        var = jnp.mean((h - mean) ** 2, axis=0, keepdims=True)
        h = (h - mean) * lax.rsqrt(var + _BN_EPS) * g + be
        if i != num_hidden_pairs - 1:
            h = _gelu_exact(h)
    return jax.nn.sigmoid(h)


if __name__ == "__main__":
    options = {
        "num_of_categorizer_layers": 3,
        "num_of_jets": 4,
        "model_dim": 8,
        "event_topology": ["tth", "ttbb", "ttcc", "ttlf"],  # last layer size = 4
        "categorization_threshold": 0.5,  # not used in forward
    }

    key = jax.random.PRNGKey(0)
    kx, kp = jax.random.split(key)
    B = 8  # batch > 1 so BatchNorm batch statistics are well defined
    x = jax.random.normal(kx, (B, options["num_of_jets"], options["model_dim"]),
                          jnp.float32)

    params = build_params(options, kp)          # logical (PyTorch-shaped) params
    packed = pack_params(params)                # lane-padded bf16 W + packed BN slabs
    last = len(options["event_topology"])

    out = categorizer_forward(x, packed, last)
    out = jax.block_until_ready(out)

    ref = reference_forward(x, params)
    assert out.shape == (B, last)
    # bf16 MXU operands => small accumulation-order differences vs XLA reference
    assert jnp.allclose(out, ref, atol=1e-2, rtol=1e-2), "mismatch vs reference"

    print("KERNEL_OK")
</pallas_src>

<mosaic_0001>
module attributes {stable_mosaic.version = 11 : i64} {
  func.func @kernel(%arg0: memref<8x32xf32, #tpu.memory_space<vmem>>, %arg1: memref<32x128xbf16, #tpu.memory_space<vmem>>, %arg2: memref<1x128xf32, #tpu.memory_space<vmem>>, %arg3: memref<128x128xbf16, #tpu.memory_space<vmem>>, %arg4: memref<3x128xf32, #tpu.memory_space<vmem>>, %arg5: memref<128x128xbf16, #tpu.memory_space<vmem>>, %arg6: memref<3x128xf32, #tpu.memory_space<vmem>>, %arg7: memref<8x128xf32, #tpu.memory_space<vmem>>) attributes {dimension_semantics = [], scalar_prefetch = 0 : i64, scratch_operands = 0 : i64, tpu.core_type = #tpu.core_type<tc>} {
    %c0 = arith.constant 0 : index
    %c0_0 = arith.constant 0 : index
    %0 = vector.load %arg0[%c0, %c0_0] : memref<8x32xf32, #tpu.memory_space<vmem>>, vector<8x32xf32>
    %c0_1 = arith.constant 0 : index
    %c0_2 = arith.constant 0 : index
    %1 = vector.load %arg1[%c0_1, %c0_2] : memref<32x128xbf16, #tpu.memory_space<vmem>>, vector<32x128xbf16>
    %c0_3 = arith.constant 0 : index
    %c0_4 = arith.constant 0 : index
    %2 = vector.load %arg2[%c0_3, %c0_4] : memref<1x128xf32, #tpu.memory_space<vmem>>, vector<1x128xf32>
    %3 = arith.truncf %0 : vector<8x32xf32> to vector<8x32xbf16>
    %cst = arith.constant dense<0.000000e+00> : vector<8x128xf32>
    %4 = tpu.matmul %3, %1, %cst {dimension_numbers = #tpu.dot_dimension_numbers<[1], [0], [0], [1], [0, 0, 1, 1], [], []>} : vector<8x32xbf16>, vector<32x128xbf16>, vector<8x128xf32> -> vector<8x128xf32>
    %5 = vector.broadcast %2 : vector<1x128xf32> to vector<8x128xf32>
    %6 = arith.addf %4, %5 : vector<8x128xf32>
    %cst_5 = arith.constant 5.000000e-01 : f32
    %7 = vector.broadcast %cst_5 : f32 to vector<8x128xf32>
    %8 = arith.mulf %7, %6 : vector<8x128xf32>
    %cst_6 = arith.constant 0.707106769 : f32
    %9 = vector.broadcast %cst_6 : f32 to vector<8x128xf32>
    %10 = arith.mulf %6, %9 : vector<8x128xf32>
    %11 = math.erf %10 : vector<8x128xf32>
    %cst_7 = arith.constant 1.000000e+00 : f32
    %12 = vector.broadcast %cst_7 : f32 to vector<8x128xf32>
    %13 = arith.addf %12, %11 : vector<8x128xf32>
    %14 = arith.mulf %8, %13 : vector<8x128xf32>
    %c0_8 = arith.constant 0 : index
    %c0_9 = arith.constant 0 : index
    %15 = vector.load %arg3[%c0_8, %c0_9] : memref<128x128xbf16, #tpu.memory_space<vmem>>, vector<128x128xbf16>
    %c0_10 = arith.constant 0 : index
    %c0_11 = arith.constant 0 : index
    %16 = vector.load %arg4[%c0_10, %c0_11] : memref<3x128xf32, #tpu.memory_space<vmem>>, vector<3x128xf32>
    %17 = vector.extract_strided_slice %16 {offsets = [0, 0], sizes = [1, 128], strides = [1, 1]} : vector<3x128xf32> to vector<1x128xf32>
    %18 = vector.extract_strided_slice %16 {offsets = [1, 0], sizes = [1, 128], strides = [1, 1]} : vector<3x128xf32> to vector<1x128xf32>
    %19 = vector.extract_strided_slice %16 {offsets = [2, 0], sizes = [1, 128], strides = [1, 1]} : vector<3x128xf32> to vector<1x128xf32>
    %20 = arith.truncf %14 : vector<8x128xf32> to vector<8x128xbf16>
    %cst_12 = arith.constant dense<0.000000e+00> : vector<8x128xf32>
    %21 = tpu.matmul %20, %15, %cst_12 {dimension_numbers = #tpu.dot_dimension_numbers<[1], [0], [0], [1], [0, 0, 1, 1], [], []>} : vector<8x128xbf16>, vector<128x128xbf16>, vector<8x128xf32> -> vector<8x128xf32>
    %22 = vector.broadcast %17 : vector<1x128xf32> to vector<8x128xf32>
    %23 = arith.addf %21, %22 : vector<8x128xf32>
    %cst_13 = arith.constant dense<0.000000e+00> : vector<128xf32>
    %24 = vector.multi_reduction <add>, %23, %cst_13 [0] : vector<8x128xf32> to vector<128xf32>
    %25 = vector.shape_cast %24 : vector<128xf32> to vector<1x128xf32>
    %cst_14 = arith.constant 8.000000e+00 : f32
    %26 = vector.broadcast %cst_14 : f32 to vector<1x128xf32>
    %27 = arith.divf %25, %26 : vector<1x128xf32>
    %28 = vector.broadcast %27 : vector<1x128xf32> to vector<8x128xf32>
    %29 = arith.subf %23, %28 : vector<8x128xf32>
    %30 = arith.mulf %29, %29 : vector<8x128xf32>
    %cst_15 = arith.constant dense<0.000000e+00> : vector<128xf32>
    %31 = vector.multi_reduction <add>, %30, %cst_15 [0] : vector<8x128xf32> to vector<128xf32>
    %32 = vector.shape_cast %31 : vector<128xf32> to vector<1x128xf32>
    %cst_16 = arith.constant 8.000000e+00 : f32
    %33 = vector.broadcast %cst_16 : f32 to vector<1x128xf32>
    %34 = arith.divf %32, %33 : vector<1x128xf32>
    %cst_17 = arith.constant 9.99999974E-6 : f32
    %35 = vector.broadcast %cst_17 : f32 to vector<1x128xf32>
    %36 = arith.addf %34, %35 : vector<1x128xf32>
    %37 = math.rsqrt %36 : vector<1x128xf32>
    %38 = arith.mulf %18, %37 : vector<1x128xf32>
    %39 = vector.broadcast %38 : vector<1x128xf32> to vector<8x128xf32>
    %40 = arith.mulf %29, %39 : vector<8x128xf32>
    %41 = vector.broadcast %19 : vector<1x128xf32> to vector<8x128xf32>
    %42 = arith.addf %40, %41 : vector<8x128xf32>
    %cst_18 = arith.constant 5.000000e-01 : f32
    %43 = vector.broadcast %cst_18 : f32 to vector<8x128xf32>
    %44 = arith.mulf %43, %42 : vector<8x128xf32>
    %cst_19 = arith.constant 0.707106769 : f32
    %45 = vector.broadcast %cst_19 : f32 to vector<8x128xf32>
    %46 = arith.mulf %42, %45 : vector<8x128xf32>
    %47 = math.erf %46 : vector<8x128xf32>
    %cst_20 = arith.constant 1.000000e+00 : f32
    %48 = vector.broadcast %cst_20 : f32 to vector<8x128xf32>
    %49 = arith.addf %48, %47 : vector<8x128xf32>
    %50 = arith.mulf %44, %49 : vector<8x128xf32>
    %c0_21 = arith.constant 0 : index
    %c0_22 = arith.constant 0 : index
    %51 = vector.load %arg5[%c0_21, %c0_22] : memref<128x128xbf16, #tpu.memory_space<vmem>>, vector<128x128xbf16>
    %c0_23 = arith.constant 0 : index
    %c0_24 = arith.constant 0 : index
    %52 = vector.load %arg6[%c0_23, %c0_24] : memref<3x128xf32, #tpu.memory_space<vmem>>, vector<3x128xf32>
    %53 = vector.extract_strided_slice %52 {offsets = [0, 0], sizes = [1, 128], strides = [1, 1]} : vector<3x128xf32> to vector<1x128xf32>
    %54 = vector.extract_strided_slice %52 {offsets = [1, 0], sizes = [1, 128], strides = [1, 1]} : vector<3x128xf32> to vector<1x128xf32>
    %55 = vector.extract_strided_slice %52 {offsets = [2, 0], sizes = [1, 128], strides = [1, 1]} : vector<3x128xf32> to vector<1x128xf32>
    %56 = arith.truncf %50 : vector<8x128xf32> to vector<8x128xbf16>
    %cst_25 = arith.constant dense<0.000000e+00> : vector<8x128xf32>
    %57 = tpu.matmul %56, %51, %cst_25 {dimension_numbers = #tpu.dot_dimension_numbers<[1], [0], [0], [1], [0, 0, 1, 1], [], []>} : vector<8x128xbf16>, vector<128x128xbf16>, vector<8x128xf32> -> vector<8x128xf32>
    %58 = vector.broadcast %53 : vector<1x128xf32> to vector<8x128xf32>
    %59 = arith.addf %57, %58 : vector<8x128xf32>
    %cst_26 = arith.constant dense<0.000000e+00> : vector<128xf32>
    %60 = vector.multi_reduction <add>, %59, %cst_26 [0] : vector<8x128xf32> to vector<128xf32>
    %61 = vector.shape_cast %60 : vector<128xf32> to vector<1x128xf32>
    %cst_27 = arith.constant 8.000000e+00 : f32
    %62 = vector.broadcast %cst_27 : f32 to vector<1x128xf32>
    %63 = arith.divf %61, %62 : vector<1x128xf32>
    %64 = vector.broadcast %63 : vector<1x128xf32> to vector<8x128xf32>
    %65 = arith.subf %59, %64 : vector<8x128xf32>
    %66 = arith.mulf %65, %65 : vector<8x128xf32>
    %cst_28 = arith.constant dense<0.000000e+00> : vector<128xf32>
    %67 = vector.multi_reduction <add>, %66, %cst_28 [0] : vector<8x128xf32> to vector<128xf32>
    %68 = vector.shape_cast %67 : vector<128xf32> to vector<1x128xf32>
    %cst_29 = arith.constant 8.000000e+00 : f32
    %69 = vector.broadcast %cst_29 : f32 to vector<1x128xf32>
    %70 = arith.divf %68, %69 : vector<1x128xf32>
    %cst_30 = arith.constant 9.99999974E-6 : f32
    %71 = vector.broadcast %cst_30 : f32 to vector<1x128xf32>
    %72 = arith.addf %70, %71 : vector<1x128xf32>
    %73 = math.rsqrt %72 : vector<1x128xf32>
    %74 = arith.mulf %54, %73 : vector<1x128xf32>
    %75 = vector.broadcast %74 : vector<1x128xf32> to vector<8x128xf32>
    %76 = arith.mulf %65, %75 : vector<8x128xf32>
    %77 = vector.broadcast %55 : vector<1x128xf32> to vector<8x128xf32>
    %78 = arith.addf %76, %77 : vector<8x128xf32>
    %79 = arith.negf %78 : vector<8x128xf32>
    %80 = math.exp %79 : vector<8x128xf32>
    %cst_31 = arith.constant 1.000000e+00 : f32
    %81 = vector.broadcast %cst_31 : f32 to vector<8x128xf32>
    %82 = arith.addf %81, %80 : vector<8x128xf32>
    %83 = arith.divf %81, %82 : vector<8x128xf32>
    %c0_32 = arith.constant 0 : index
    %c0_33 = arith.constant 0 : index
    %84 = vector.load %arg7[%c0_32, %c0_33] : memref<8x128xf32, #tpu.memory_space<vmem>>, vector<8x128xf32>
    tpu.vector_store %arg7[%c0_32, %c0_33], %83 {strides = array<i32>} : memref<8x128xf32, #tpu.memory_space<vmem>>, vector<8x128xf32>,
    return
  }
}

</mosaic_0001>

<llo_original>
// kernel: tpu_custom_call.1
$region0: #{tpu_custom_call.1}
  #allocation0 [shape = 'u32[]', space=smem, size = 0x4, offset = 0x4, fixed_abs, tag = 'smem constant byte address 0x4 - core index']
  #allocation1 [shape = 'u32[72,128]{1,0:T(1,128)}', space=vmem, size = 0x9000, scoped, tag = 'internal scratch']
  %s0 = inlined_call_operand.hbm [shape: f32[8,32], index: 0, kind: input, shape index: {}]
  %s1 = inlined_call_operand.hbm [shape: bf16[32,128], index: 1, kind: input, shape index: {}]
  %s2 = inlined_call_operand.vmem [shape: f32[1,128], index: 2, kind: input, shape index: {}]
  %s3 = inlined_call_operand.hbm [shape: bf16[128,128], index: 3, kind: input, shape index: {}]
  %s4 = inlined_call_operand.hbm [shape: f32[3,128], index: 4, kind: input, shape index: {}]
  %s5 = inlined_call_operand.hbm [shape: bf16[128,128], index: 5, kind: input, shape index: {}]
  %s6 = inlined_call_operand.vmem [shape: f32[3,128], index: 6, kind: input, shape index: {}]
  %s7 = inlined_call_operand.hbm [shape: f32[8,128], index: 7, kind: output, shape index: {}]
  %s8 = sld [smem:[#allocation0]]
  $region58: #{tpu_custom_call.1} parent=0
    _
  %s10 = ssub.s32 1, %s8
  %s11 = scalar_select 0, %s10, %s8
  $region1: #{tpu_custom_call.1} parent=0
    #allocation2 [shape = 'u8[4096]{0}', space=vmem, size = 0x1000, scoped, tag = 'input window, operand 0, single buffered']
    #allocation3 [shape = 's32[1]{0}', space=sflag, size = 0x4, scoped, tag = 'scoped memory for tpu_custom_call.1']
    #allocation4 [shape = 's32[1]{0}', space=sflag, size = 0x4, scoped, tag = 'scoped memory for tpu_custom_call.1']
    #allocation5 [shape = 'u8[8192]{0}', space=vmem, size = 0x2000, scoped, tag = 'input window, operand 1, single buffered']
    #allocation6 [shape = 's32[1]{0}', space=sflag, size = 0x4, scoped, tag = 'scoped memory for tpu_custom_call.1']
    #allocation7 [shape = 'u8[32768]{0}', space=vmem, size = 0x8000, scoped, tag = 'input window, operand 3, single buffered']
    #allocation8 [shape = 'u8[2048]{0}', space=vmem, size = 0x800, scoped, tag = 'input window, operand 4, single buffered']
    #allocation9 [shape = 's32[1]{0}', space=sflag, size = 0x4, scoped, tag = 'scoped memory for tpu_custom_call.1']
    #allocation10 [shape = 'u8[32768]{0}', space=vmem, size = 0x8000, scoped, tag = 'input window, operand 5, single buffered']
    #allocation11 [shape = 'u8[4096]{0}', space=vmem, size = 0x1000, scoped, tag = 'output window, operand 0, single buffered']
    %12 = vsyncpa [#allocation3], 0
    %13 = vsyncpa [#allocation6], 0
    %14 = vsyncpa [#allocation9], 0
    %15 = vsyncpa [#allocation4], 0
    // Predicated region
    $region2: #{tpu_custom_call.1} parent=1 // pred_check
      _
    $region3: #{tpu_custom_call.1} parent=1 // pred_check_branch
      %17 = sbr.rel (0) target = $region5
    $region4: #{tpu_custom_call.1} parent=1 // pred_region
      %19 = vsyncadd [#allocation3], 0
      %s21 = sshll.u32 %s0, 4
      %s22 = int_to_ptr.hbm [resolvable:$true] %s21
      %s23 = sshll.u32 [#allocation2], 4
      %s24 = int_to_ptr.vmem [resolvable:$true] %s23
      %26 = dma.hbm_to_vmem [thread:$0]  %s22, 128, %s24, [#allocation3]
    $region5: #{tpu_custom_call.1} parent=1 // pred_fallthru
      _
    // Predicated region
    $region6: #{tpu_custom_call.1} parent=1 // pred_check
      _
    $region7: #{tpu_custom_call.1} parent=1 // pred_check_branch
      %28 = sbr.rel (0) target = $region9
    $region8: #{tpu_custom_call.1} parent=1 // pred_region
      %30 = vsyncadd [#allocation6], 0
      %s31 = sshll.u32 %s1, 4
      %s32 = int_to_ptr.hbm [resolvable:$true] %s31
      %s33 = sshll.u32 [#allocation5], 4
      %s34 = int_to_ptr.vmem [resolvable:$true] %s33
      %39 = dma.hbm_to_vmem [thread:$0]  %s32, 256, %s34, [#allocation6], 64, 64, 4
    $region9: #{tpu_custom_call.1} parent=1 // pred_fallthru
      _
    // Predicated region
    $region10: #{tpu_custom_call.1} parent=1 // pred_check
      _
    $region11: #{tpu_custom_call.1} parent=1 // pred_check_branch
      %41 = sbr.rel (0) target = $region13
    $region12: #{tpu_custom_call.1} parent=1 // pred_region
      _
    $region13: #{tpu_custom_call.1} parent=1 // pred_fallthru
      _
    // Predicated region
    $region14: #{tpu_custom_call.1} parent=1 // pred_check
      _
    $region15: #{tpu_custom_call.1} parent=1 // pred_check_branch
      %43 = sbr.rel (0) target = $region17
    $region16: #{tpu_custom_call.1} parent=1 // pred_region
      %45 = vsyncadd [#allocation6], 0
      %s46 = sshll.u32 %s3, 4
      %s47 = int_to_ptr.hbm [resolvable:$true] %s46
      %s48 = sshll.u32 [#allocation7], 4
      %s49 = int_to_ptr.vmem [resolvable:$true] %s48
      %54 = dma.hbm_to_vmem [thread:$0]  %s47, 1024, %s49, [#allocation6], 64, 64, 4
    $region17: #{tpu_custom_call.1} parent=1 // pred_fallthru
      _
    // Predicated region
    $region18: #{tpu_custom_call.1} parent=1 // pred_check
      _
    $region19: #{tpu_custom_call.1} parent=1 // pred_check_branch
      %56 = sbr.rel (0) target = $region21
    $region20: #{tpu_custom_call.1} parent=1 // pred_region
      %58 = vsyncadd [#allocation9], 0
      %s60 = sshll.u32 %s4, 4
      %s61 = int_to_ptr.hbm [resolvable:$true] %s60
      %s62 = sshll.u32 [#allocation8], 4
      %s63 = int_to_ptr.vmem [resolvable:$true] %s62
      %65 = dma.hbm_to_vmem [thread:$0]  %s61, 64, %s63, [#allocation9]
    $region21: #{tpu_custom_call.1} parent=1 // pred_fallthru
      _
    // Predicated region
    $region22: #{tpu_custom_call.1} parent=1 // pred_check
      _
    $region23: #{tpu_custom_call.1} parent=1 // pred_check_branch
      %67 = sbr.rel (0) target = $region25
    $region24: #{tpu_custom_call.1} parent=1 // pred_region
      %69 = vsyncadd [#allocation9], 0
      %s70 = sshll.u32 %s5, 4
      %s71 = int_to_ptr.hbm [resolvable:$true] %s70
      %s72 = sshll.u32 [#allocation10], 4
      %s73 = int_to_ptr.vmem [resolvable:$true] %s72
      %78 = dma.hbm_to_vmem [thread:$0]  %s71, 1024, %s73, [#allocation9], 64, 64, 4
    $region25: #{tpu_custom_call.1} parent=1 // pred_fallthru
      _
    // Predicated region
    $region26: #{tpu_custom_call.1} parent=1 // pred_check
      _
    $region27: #{tpu_custom_call.1} parent=1 // pred_check_branch
      %80 = sbr.rel (0) target = $region29
    $region28: #{tpu_custom_call.1} parent=1 // pred_region
      _
    $region29: #{tpu_custom_call.1} parent=1 // pred_fallthru
      _
    // Predicated region
    $region30: #{tpu_custom_call.1} parent=1 // pred_check
      _
    $region31: #{tpu_custom_call.1} parent=1 // pred_check_branch
      %82 = sbr.rel (0) target = $region33
    $region32: #{tpu_custom_call.1} parent=1 // pred_region
      %84 = dma.done [#allocation3], 128
    $region33: #{tpu_custom_call.1} parent=1 // pred_fallthru
      _
    // Predicated region
    $region34: #{tpu_custom_call.1} parent=1 // pred_check
      _
    $region35: #{tpu_custom_call.1} parent=1 // pred_check_branch
      %86 = sbr.rel (0) target = $region37
    $region36: #{tpu_custom_call.1} parent=1 // pred_region
      %88 = dma.done [#allocation6], 256
    $region37: #{tpu_custom_call.1} parent=1 // pred_fallthru
      _
    // Predicated region
    $region38: #{tpu_custom_call.1} parent=1 // pred_check
      _
    $region39: #{tpu_custom_call.1} parent=1 // pred_check_branch
      %90 = sbr.rel (0) target = $region41
    $region40: #{tpu_custom_call.1} parent=1 // pred_region
      %92 = dma.done [#allocation6], 1024
    $region41: #{tpu_custom_call.1} parent=1 // pred_fallthru
      _
    // Predicated region
    $region42: #{tpu_custom_call.1} parent=1 // pred_check
      _
    $region43: #{tpu_custom_call.1} parent=1 // pred_check_branch
      %94 = sbr.rel (0) target = $region45
    $region44: #{tpu_custom_call.1} parent=1 // pred_region
      %96 = dma.done [#allocation9], 64
    $region45: #{tpu_custom_call.1} parent=1 // pred_fallthru
      _
    // Predicated region
    $region46: #{tpu_custom_call.1} parent=1 // pred_check
      _
    $region47: #{tpu_custom_call.1} parent=1 // pred_check_branch
      %98 = sbr.rel (0) target = $region49
    $region48: #{tpu_custom_call.1} parent=1 // pred_region
      %100 = dma.done [#allocation9], 1024
    $region49: #{tpu_custom_call.1} parent=1 // pred_fallthru
      _
    %v102 = vld [vmem:[#allocation2] sm:$0xff]
    %v103 = vld [vmem:[#allocation5] sm:$0xf]
    %v104 = vld [vmem:[#allocation5 + $0x4] sm:$0xf]
    %v105 = vld [vmem:[#allocation5 + $0x8] sm:$0xf]
    %v106 = vld [vmem:[#allocation5 + $0xc] sm:$0xf]
    %v107 = vld [vmem:[%s2] sm:$0x1]
    %v108 = vpack.c.bf16 %v102, %v102
    %v110 = vperm.slane %v107, 0
    %v116 = vunpack.c.l.b16 %v103
    %v117 = vunpack.c.l.b16 %v104
    %v118 = vunpack.c.l.b16 %v105
    %v119 = vunpack.c.l.b16 %v106
    %v120 = vpack.c.b16 %v117, %v116
    %v121 = vpack.c.b16 %v119, %v118
    %vm124 = vcmask 261120
    %v126 = vsel %vm124, %v108, 0
    %128 = vmatpush.bf16.msra.mxu0 0
    %129 = vmatpush.bf16.msra.mxu0 0
    %130 = vmatpush.bf16.msra.mxu0 0
    %131 = vmatpush.bf16.msra.mxu0 0
    %132 = vmatpush.bf16.msra.mxu0 0
    %133 = vmatpush.bf16.msra.mxu0 0
    %134 = vmatpush.bf16.msra.mxu0 %v121
    %135 = vmatpush.bf16.msra.mxu0 %v120
    %136 = vmatmul.bf16.gmra.mxu0 %v126
    %v137 = vpop.f32.mrf.mxu0
    %v138 = vadd.f32 %v110, %v137
    %v139 = vpop.f32.mrf.mxu0
    %140 = vdwg.mxu0
    %v141 = vmul.f32 %v138, 0.5
    %v142 = vmul.f32 %v138, 0.70710677
    %v143 = vmul.f32 %v142, %v142
    %v144 = vmin.f32 16.0, %v143
    %v145 = vmul.f32 %v144, 2.1237322e-06
    %v146 = vadd.f32 %v145, 0.00028619796
    %v147 = vmul.f32 %v144, %v146
    %v148 = vadd.f32 %v147, 0.0036580483
    %v149 = vmul.f32 %v144, %v148
    %v150 = vadd.f32 %v149, 0.05243302
    %v151 = vmul.f32 %v144, %v150
    %v152 = vadd.f32 %v151, 0.18741608
    %v153 = vmul.f32 %v144, %v152
    %v154 = vadd.f32 %v153, 1.1283791
    %v155 = vmul.f32 %v142, %v154
    %v156 = vmul.f32 %v144, 3.8918573e-05
    %v157 = vadd.f32 %v156, 0.001143296
    %v158 = vmul.f32 %v144, %v157
    %v159 = vadd.f32 %v158, 0.014752088
    %v160 = vmul.f32 %v144, %v159
    %v161 = vadd.f32 %v160, 0.112945676
    %v162 = vmul.f32 %v144, %v161
    %v163 = vadd.f32 %v162, 0.4994258
    %v164 = vmul.f32 %v144, %v163
    %v165 = vadd.f32 %v164, 1.0
    %v166 = vrcp.pop %v165
    %v167 = vmul.f32 %v165, %v166
    %v168 = vsub.f32 1.0, %v167
    %v169 = vmul.f32 %v166, %v168
    %v170 = vadd.f32 %v166, %v169
    %vm171 = vweird.f32 %v165
    %vm172 = vweird.f32 %v166
    %vm173 = vmor %vm171, %vm172
    %v174 = vsel %vm173, %v166, %v170
    %v175 = vand.u32 2147483647, %v165
    %vm176 = vcmp.eq.f32.partialorder %v175, 8.507059e+37
    %v177 = vand.u32 %v165, 2147483648
    %v178 = vor.u32 1.1754944e-38, %v177
    %v179 = vsel %vm176, %v178, %v174
    %v180 = vmul.f32 %v155, %v179
    %v181 = vmin.f32 %v180, 1.0
    %v182 = vmax.f32 %v181, -1.0
    %v183 = vadd.f32 %v182, 1.0
    %v184 = vmul.f32 %v141, %v183
    %v185 = vld [vmem:[#allocation7] sm:$0xf]
    %v186 = vld [vmem:[#allocation7 + $0x4] sm:$0xf]
    %v187 = vld [vmem:[#allocation7 + $0x8] sm:$0xf]
    %v188 = vld [vmem:[#allocation7 + $0xc] sm:$0xf]
    %v189 = vld [vmem:[#allocation7 + $0x10] sm:$0xf]
    %v190 = vld [vmem:[#allocation7 + $0x14] sm:$0xf]
    %v191 = vld [vmem:[#allocation7 + $0x18] sm:$0xf]
    %v192 = vld [vmem:[#allocation7 + $0x1c] sm:$0xf]
    %v193 = vld [vmem:[#allocation7 + $0x20] sm:$0xf]
    %v194 = vld [vmem:[#allocation7 + $0x24] sm:$0xf]
    %v195 = vld [vmem:[#allocation7 + $0x28] sm:$0xf]
    %v196 = vld [vmem:[#allocation7 + $0x2c] sm:$0xf]
    %v197 = vld [vmem:[#allocation7 + $0x30] sm:$0xf]
    %v198 = vld [vmem:[#allocation7 + $0x34] sm:$0xf]
    %v199 = vld [vmem:[#allocation7 + $0x38] sm:$0xf]
    %v200 = vld [vmem:[#allocation7 + $0x3c] sm:$0xf]
    %v201 = vld [vmem:[#allocation8] sm:$0x7]
    %v202 = vpack.c.bf16 %v184, %v184
    %v203 = vperm.slane %v201, 0
    %v220 = vunpack.c.l.b16 %v185
    %v221 = vunpack.c.l.b16 %v186
    %v222 = vunpack.c.l.b16 %v187
    %v223 = vunpack.c.l.b16 %v188
    %v224 = vunpack.c.l.b16 %v189
    %v225 = vunpack.c.l.b16 %v190
    %v226 = vunpack.c.l.b16 %v191
    %v227 = vunpack.c.l.b16 %v192
    %v228 = vunpack.c.l.b16 %v193
    %v229 = vunpack.c.l.b16 %v194
    %v230 = vunpack.c.l.b16 %v195
    %v231 = vunpack.c.l.b16 %v196
    %v232 = vunpack.c.l.b16 %v197
    %v233 = vunpack.c.l.b16 %v198
    %v234 = vunpack.c.l.b16 %v199
    %v235 = vunpack.c.l.b16 %v200
    %v236 = vpack.c.b16 %v221, %v220
    %v237 = vpack.c.b16 %v223, %v222
    %v238 = vpack.c.b16 %v225, %v224
    %v239 = vpack.c.b16 %v227, %v226
    %v240 = vpack.c.b16 %v229, %v228
    %v241 = vpack.c.b16 %v231, %v230
    %v242 = vpack.c.b16 %v233, %v232
    %v243 = vpack.c.b16 %v235, %v234
    %252 = vmatpush.bf16.msra.mxu0 %v243
    %253 = vmatpush.bf16.msra.mxu0 %v242
    %254 = vmatpush.bf16.msra.mxu0 %v241
    %255 = vmatpush.bf16.msra.mxu0 %v240
    %256 = vmatpush.bf16.msra.mxu0 %v239
    %257 = vmatpush.bf16.msra.mxu0 %v238
    %258 = vmatpush.bf16.msra.mxu0 %v237
    %259 = vmatpush.bf16.msra.mxu0 %v236
    %260 = vmatmul.bf16.gmra.mxu0 %v202
    %v261 = vpop.f32.mrf.mxu0
    %v262 = vadd.f32 %v203, %v261
    %v263 = vpop.f32.mrf.mxu0
    %264 = vdwg.mxu0
    %v265 = vrot.slane %v262, 4
    %v266 = vadd.f32 %v262, %v265
    %v267 = vrot.slane %v266, 2
    %v268 = vadd.f32 %v266, %v267
    %v269 = vrot.slane %v268, 1
    %v270 = vadd.f32 %v268, %v269
    %v271 = vrcp.pop 8.0
    %v272 = vmul.f32 8.0, %v271
    %v273 = vsub.f32 1.0, %v272
    %v274 = vmul.f32 %v271, %v273
    %v275 = vadd.f32 %v271, %v274
    %vm276 = vweird.f32 %v271
    %v277 = vsel %vm276, %v271, %v275
    %v278 = vmul.f32 %v270, %v277
    %v279 = vsub.f32 %v262, %v278
    %v280 = vmul.f32 %v279, %v279
    %v281 = vrot.slane %v280, 4
    %v282 = vadd.f32 %v280, %v281
    %v283 = vrot.slane %v282, 2
    %v284 = vadd.f32 %v282, %v283
    %v285 = vrot.slane %v284, 1
    %v286 = vadd.f32 %v284, %v285
    %v287 = vmul.f32 %v286, %v277
    %v288 = vadd.f32 %v287, 1e-05
    %v289 = vrsqrt.pop %v288
    %v290 = vmul.f32 %v289, %v288
    %v291 = vmul.f32 %v290, %v289
    %v292 = vmul.f32 0.5, %v291
    %v293 = vsub.f32 1.5, %v292
    %v294 = vmul.f32 %v289, %v293
    %vm295 = vweird.f32 %v288
    %vm296 = vweird.f32 %v289
    %vm297 = vmor %vm295, %vm296
    %v298 = vsel %vm297, %v289, %v294
    %v299 = vmul.f32 %v201, %v298
    %v300 = vperm.slane %v299, 1
    %v301 = vmul.f32 %v279, %v300
    %v302 = vperm.slane %v201, 2
    %v303 = vadd.f32 %v301, %v302
    %v304 = vmul.f32 %v303, 0.5
    %v305 = vmul.f32 %v303, 0.70710677
    %v306 = vmul.f32 %v305, %v305
    %v307 = vmin.f32 16.0, %v306
    %v308 = vmul.f32 %v307, 2.1237322e-06
    %v309 = vadd.f32 %v308, 0.00028619796
    %v310 = vmul.f32 %v307, %v309
    %v311 = vadd.f32 %v310, 0.0036580483
    %v312 = vmul.f32 %v307, %v311
    %v313 = vadd.f32 %v312, 0.05243302
    %v314 = vmul.f32 %v307, %v313
    %v315 = vadd.f32 %v314, 0.18741608
    %v316 = vmul.f32 %v307, %v315
    %v317 = vadd.f32 %v316, 1.1283791
    %v318 = vmul.f32 %v305, %v317
    %v319 = vmul.f32 %v307, 3.8918573e-05
    %v320 = vadd.f32 %v319, 0.001143296
    %v321 = vmul.f32 %v307, %v320
    %v322 = vadd.f32 %v321, 0.014752088
    %v323 = vmul.f32 %v307, %v322
    %v324 = vadd.f32 %v323, 0.112945676
    %v325 = vmul.f32 %v307, %v324
    %v326 = vadd.f32 %v325, 0.4994258
    %v327 = vmul.f32 %v307, %v326
    %v328 = vadd.f32 %v327, 1.0
    %v329 = vrcp.pop %v328
    %v330 = vmul.f32 %v328, %v329
    %v331 = vsub.f32 1.0, %v330
    %v332 = vmul.f32 %v329, %v331
    %v333 = vadd.f32 %v329, %v332
    %vm334 = vweird.f32 %v328
    %vm335 = vweird.f32 %v329
    %vm336 = vmor %vm334, %vm335
    %v337 = vsel %vm336, %v329, %v333
    %v338 = vand.u32 2147483647, %v328
    %vm339 = vcmp.eq.f32.partialorder %v338, 8.507059e+37
    %v340 = vand.u32 %v328, 2147483648
    %v341 = vor.u32 1.1754944e-38, %v340
    %v342 = vsel %vm339, %v341, %v337
    %v343 = vmul.f32 %v318, %v342
    %v344 = vmin.f32 %v343, 1.0
    %v345 = vmax.f32 %v344, -1.0
    %v346 = vadd.f32 %v345, 1.0
    %v347 = vmul.f32 %v304, %v346
    %v348 = vld [vmem:[#allocation10] sm:$0xf]
    %v349 = vld [vmem:[#allocation10 + $0x4] sm:$0xf]
    %v350 = vld [vmem:[#allocation10 + $0x8] sm:$0xf]
    %v351 = vld [vmem:[#allocation10 + $0xc] sm:$0xf]
    %v352 = vld [vmem:[#allocation10 + $0x10] sm:$0xf]
    %v353 = vld [vmem:[#allocation10 + $0x14] sm:$0xf]
    %v354 = vld [vmem:[#allocation10 + $0x18] sm:$0xf]
    %v355 = vld [vmem:[#allocation10 + $0x1c] sm:$0xf]
    %v356 = vld [vmem:[#allocation10 + $0x20] sm:$0xf]
    %v357 = vld [vmem:[#allocation10 + $0x24] sm:$0xf]
    %v358 = vld [vmem:[#allocation10 + $0x28] sm:$0xf]
    %v359 = vld [vmem:[#allocation10 + $0x2c] sm:$0xf]
    %v360 = vld [vmem:[#allocation10 + $0x30] sm:$0xf]
    %v361 = vld [vmem:[#allocation10 + $0x34] sm:$0xf]
    %v362 = vld [vmem:[#allocation10 + $0x38] sm:$0xf]
    %v363 = vld [vmem:[#allocation10 + $0x3c] sm:$0xf]
    %v364 = vld [vmem:[%s6] sm:$0x7]
    %v365 = vpack.c.bf16 %v347, %v347
    %v366 = vperm.slane %v364, 0
    %v383 = vunpack.c.l.b16 %v348
    %v384 = vunpack.c.l.b16 %v349
    %v385 = vunpack.c.l.b16 %v350
    %v386 = vunpack.c.l.b16 %v351
    %v387 = vunpack.c.l.b16 %v352
    %v388 = vunpack.c.l.b16 %v353
    %v389 = vunpack.c.l.b16 %v354
    %v390 = vunpack.c.l.b16 %v355
    %v391 = vunpack.c.l.b16 %v356
    %v392 = vunpack.c.l.b16 %v357
    %v393 = vunpack.c.l.b16 %v358
    %v394 = vunpack.c.l.b16 %v359
    %v395 = vunpack.c.l.b16 %v360
    %v396 = vunpack.c.l.b16 %v361
    %v397 = vunpack.c.l.b16 %v362
    %v398 = vunpack.c.l.b16 %v363
    %v399 = vpack.c.b16 %v384, %v383
    %v400 = vpack.c.b16 %v386, %v385
    %v401 = vpack.c.b16 %v388, %v387
    %v402 = vpack.c.b16 %v390, %v389
    %v403 = vpack.c.b16 %v392, %v391
    %v404 = vpack.c.b16 %v394, %v393
    %v405 = vpack.c.b16 %v396, %v395
    %v406 = vpack.c.b16 %v398, %v397
    %415 = vmatpush.bf16.msra.mxu0 %v406
    %416 = vmatpush.bf16.msra.mxu0 %v405
    %417 = vmatpush.bf16.msra.mxu0 %v404
    %418 = vmatpush.bf16.msra.mxu0 %v403
    %419 = vmatpush.bf16.msra.mxu0 %v402
    %420 = vmatpush.bf16.msra.mxu0 %v401
    %421 = vmatpush.bf16.msra.mxu0 %v400
    %422 = vmatpush.bf16.msra.mxu0 %v399
    %423 = vmatmul.bf16.gmra.mxu0 %v365
    %v424 = vpop.f32.mrf.mxu0
    %v425 = vadd.f32 %v366, %v424
    %v426 = vpop.f32.mrf.mxu0
    %427 = vdwg.mxu0
    %v428 = vrot.slane %v425, 4
    %v429 = vadd.f32 %v425, %v428
    %v430 = vrot.slane %v429, 2
    %v431 = vadd.f32 %v429, %v430
    %v432 = vrot.slane %v431, 1
    %v433 = vadd.f32 %v431, %v432
    %v434 = vmul.f32 %v433, %v277
    %v435 = vsub.f32 %v425, %v434
    %v436 = vmul.f32 %v435, %v435
    %v437 = vrot.slane %v436, 4
    %v438 = vadd.f32 %v436, %v437
    %v439 = vrot.slane %v438, 2
    %v440 = vadd.f32 %v438, %v439
    %v441 = vrot.slane %v440, 1
    %v442 = vadd.f32 %v440, %v441
    %v443 = vmul.f32 %v442, %v277
    %v444 = vadd.f32 %v443, 1e-05
    %v445 = vrsqrt.pop %v444
    %v446 = vmul.f32 %v445, %v444
    %v447 = vmul.f32 %v446, %v445
    %v448 = vmul.f32 0.5, %v447
    %v449 = vsub.f32 1.5, %v448
    %v450 = vmul.f32 %v445, %v449
    %vm451 = vweird.f32 %v444
    %vm452 = vweird.f32 %v445
    %vm453 = vmor %vm451, %vm452
    %v454 = vsel %vm453, %v445, %v450
    %v455 = vmul.f32 %v364, %v454
    %v456 = vperm.slane %v455, 1
    %v457 = vmul.f32 %v435, %v456
    %v458 = vperm.slane %v364, 2
    %v459 = vadd.f32 %v457, %v458
    %v460 = vxor.u32 %v459, 2147483648
    %v461 = vmul.f32 %v460, 1.442695
    %v462 = vpow.pop %v461
    %v463 = vadd.f32 %v462, 1.0
    %v464 = vrcp.pop %v463
    %v465 = vmul.f32 %v463, %v464
    %v466 = vsub.f32 1.0, %v465
    %v467 = vmul.f32 %v464, %v466
    %v468 = vadd.f32 %v464, %v467
    %vm469 = vweird.f32 %v463
    %vm470 = vweird.f32 %v464
    %vm471 = vmor %vm469, %vm470
    %v472 = vsel %vm471, %v464, %v468
    %v473 = vand.u32 2147483647, %v463
    %vm474 = vcmp.eq.f32.partialorder %v473, 8.507059e+37
    %v475 = vand.u32 %v463, 2147483648
    %v476 = vor.u32 1.1754944e-38, %v475
    %v477 = vsel %vm474, %v476, %v472
    %v478 = vmul.f32 1.0, %v477
    %479 = vst [vmem:[#allocation11] sm:$0xff] %v478
    // Predicated region
    $region50: #{tpu_custom_call.1} parent=1 // pred_check
      _
    $region51: #{tpu_custom_call.1} parent=1 // pred_check_branch
      %481 = sbr.rel (0) target = $region53
    $region52: #{tpu_custom_call.1} parent=1 // pred_region
      %483 = vsyncadd [#allocation4], 0
      %s485 = sshll.u32 [#allocation11], 4
      %s486 = int_to_ptr.vmem [resolvable:$true] %s485
      %s487 = sshll.u32 %s7, 4
      %s488 = int_to_ptr.hbm [resolvable:$true] %s487
      %490 = dma.vmem_to_hbm [thread:$0]  %s486, 128, %s488, [#allocation4]
    $region53: #{tpu_custom_call.1} parent=1 // pred_fallthru
      _
    // Predicated region
    $region54: #{tpu_custom_call.1} parent=1 // pred_check
      _
    $region55: #{tpu_custom_call.1} parent=1 // pred_check_branch
      %492 = sbr.rel (0) target = $region57
    $region56: #{tpu_custom_call.1} parent=1 // pred_region
      %494 = dma.done [#allocation4], 128
    $region57: #{tpu_custom_call.1} parent=1 // pred_fallthru
      _
    %495 = vsyncpa [#allocation3], 1
    %496 = vsyncpa [#allocation6], 1
    %497 = vsyncpa [#allocation9], 1
    %498 = vsyncpa [#allocation4], 1

</llo_original>
